<compile_context>
chip_gen: v6e
topology: v6e:2x2x1
jax: 0.10.0
libtpu: 0.0.40
codegen_flags: <defaults>
</compile_context>

<pallas_src>
import functools
import math

import jax
import jax.numpy as jnp
from jax.experimental import pallas as pl
from jax.experimental.pallas import tpu as pltpu


def _round_up(x, m):
    return ((x + m - 1) // m) * m


def _cdiv(a, b):
    return -(-a // b)


def _vmem_capacity_bytes():
    """Physical VMEM of the current chip (generation-aware), with a safe fallback."""
    try:
        return int(pltpu.get_tpu_info().vmem_capacity_bytes)
    except Exception:
        return 64 * 1024 * 1024      # v7x floor; safe on every generation


def _vmem_limit(request_bytes):
    cap = _vmem_capacity_bytes() - 4 * 1024 * 1024       # leave headroom below physical VMEM
    return int(max(1 << 20, min(max(request_bytes, 32 * 1024 * 1024), cap)))


def _pick_mxu_tile(dim, cap=512):
    """Tile for an MXU-facing axis: the full dim if small, else the largest multiple of
    128 <= cap that divides dim exactly (e.g. 768 -> 384, so no padded FLOPs), else cap
    (zero padding is then required)."""
    if dim <= cap:
        return dim
    for t in range(cap - cap % 128, 127, -128):
        if dim % t == 0:
            return t
    return cap


# ---------------------------------------------------------------------------
# Tiled Linear:  y[M, N] = x[M, K] @ W[N, K]^T + b[N]   (PyTorch Linear layout)
# ---------------------------------------------------------------------------
def _linear_kernel(x_ref, w_ref, b_ref, o_ref, acc_ref, *, mxu_dtype):
    # x_ref: (tm, tk)   w_ref: (tn, tk)   b_ref: (1, tn)   o_ref: (tm, tn)
    k = pl.program_id(2)

    @pl.when(k == 0)
    def _():
        acc_ref[...] = jnp.zeros_like(acc_ref)

    # Contract K of both operands: the MXU consumes W in its native [out, in] layout
    # (same "NT" pattern as q @ k^T in flash attention), so no weight transpose is
    # materialized anywhere (verify with pl.lower_as_mlir if in doubt on a new chip).
    acc_ref[...] += jax.lax.dot_general(
        x_ref[...].astype(mxu_dtype), w_ref[...].astype(mxu_dtype),
        dimension_numbers=(((1,), (1,)), ((), ())),
        preferred_element_type=jnp.float32)

    @pl.when(k == pl.num_programs(2) - 1)
    def _():
        o_ref[...] = (acc_ref[...] + b_ref[...].astype(jnp.float32)).astype(o_ref.dtype)


def linear_pallas(x, weight, bias, use_bf16_mxu=False):
    """x: [M, K] f32, weight: [N, K] (PyTorch [out, in]), bias: [N] -> [M, N]."""
    M, K = x.shape
    N, K2 = weight.shape
    assert K2 == K and bias.shape == (N,)

    # Row tile: one big block up to 2048 rows (per-grid-step overhead ~0.35us, and the
    # weight is re-streamed from HBM once per M block); ~1024-row blocks beyond that.
    # No "keep >= 2 M blocks" heuristic: v7x dual-TC parallelism comes from the N axis.
    if M <= 2048:
        tm = _round_up(max(M, 8), 8)
    else:
        num_m = _cdiv(M, 1024)
        tm = _round_up(_cdiv(M, num_m), 8)
    M_pad = _round_up(M, tm)

    # K / N tiles that divide exactly whenever possible (no padded MXU work); a large
    # weight never has to sit fully resident in VMEM.
    tk = _pick_mxu_tile(K)
    tn = _pick_mxu_tile(N)
    K_pad = _round_up(K, tk)
    N_pad = _round_up(N, tn)

    # Zero-pad only when needed (padded K columns contribute nothing; padded M/N rows
    # and columns are sliced off afterwards).
    x_p = x
    if (M_pad, K_pad) != (M, K):
        x_p = jnp.zeros((M_pad, K_pad), x.dtype).at[:M, :K].set(x)
    w_p = weight
    if (N_pad, K_pad) != (N, K):
        w_p = jnp.zeros((N_pad, K_pad), weight.dtype).at[:N, :K].set(weight)
    b_p = bias.reshape(1, N)
    if N_pad != N:
        b_p = jnp.zeros((1, N_pad), bias.dtype).at[:, :N].set(b_p)

    grid = (M_pad // tm, N_pad // tn, K_pad // tk)

    itemsize = jnp.dtype(x.dtype).itemsize
    cost = pl.CostEstimate(
        flops=2 * M_pad * N_pad * K_pad,
        transcendentals=0,
        bytes_accessed=itemsize * (M_pad * K_pad + N_pad * K_pad + M_pad * N_pad + N_pad),
    )

    # Double-buffered x/W/b tiles + double-buffered out tile + f32 accumulator + slack.
    req = 4 * (2 * (tm * tk + tn * tk + tn) + 2 * tm * tn + tm * tn) + (2 << 20)

    mxu_dtype = jnp.bfloat16 if use_bf16_mxu else jnp.float32

    out = pl.pallas_call(
        functools.partial(_linear_kernel, mxu_dtype=mxu_dtype),
        out_shape=jax.ShapeDtypeStruct((M_pad, N_pad), x.dtype),
        grid_spec=pltpu.PrefetchScalarGridSpec(
            num_scalar_prefetch=0,
            grid=grid,
            in_specs=[
                pl.BlockSpec((tm, tk), lambda i, j, k: (i, k)),   # x tile
                pl.BlockSpec((tn, tk), lambda i, j, k: (j, k)),   # W tile ([out, in])
                pl.BlockSpec((1, tn), lambda i, j, k: (0, j)),    # bias row
            ],
            out_specs=pl.BlockSpec((tm, tn), lambda i, j, k: (i, j)),
            scratch_shapes=[pltpu.VMEM((tm, tn), jnp.float32)],
        ),
        compiler_params=pltpu.CompilerParams(
            dimension_semantics=("parallel", "parallel", "arbitrary"),
            vmem_limit_bytes=_vmem_limit(req),
        ),
        cost_estimate=cost,
    )(x_p, w_p, b_p)

    if (M_pad, N_pad) != (M, N):
        out = out[:M, :N]
    return out


# ---------------------------------------------------------------------------
# Multi-head attention core.
#
# Input is the fused QKV activation [B, S, 3H] whose columns, per head group g of G
# heads, are the contiguous block [q_g | k_g | v_g] (arranged by the fused weight
# row ordering in gext_attention).  Grid = (batch, head_group); each step loads one
# (S, 3*G*d) block and writes the (S, G*d) merged-head context columns directly into
# the [B, S, H] output -- no wrapper-side head transposes anywhere.
# ---------------------------------------------------------------------------
def _attention_kernel(qkv_ref, o_ref, *, G, d, scale, mxu_dtype):
    Gd = G * d
    blk = qkv_ref[0]                                    # (S, 3*Gd) = [q | k | v]
    ctx_parts = []
    # G is a small static int -> unrolled per-head matmuls (each feeds the MXU).
    for g in range(G):
        q = blk[:, g * d:(g + 1) * d] * scale            # fold 1/sqrt(d) into q (S*d ops)
        k = blk[:, Gd + g * d:Gd + (g + 1) * d]
        v = blk[:, 2 * Gd + g * d:2 * Gd + (g + 1) * d]
        # q @ k^T contracting the last dim of both operands (MXU-native, no transpose).
        s = jax.lax.dot_general(
            q.astype(mxu_dtype), k.astype(mxu_dtype),
            dimension_numbers=(((1,), (1,)), ((), ())),
            preferred_element_type=jnp.float32)          # (S, S)
        m = jnp.max(s, axis=-1, keepdims=True)
        p = jnp.exp(s - m)
        l = jnp.sum(p, axis=-1, keepdims=True)           # (S, 1)
        # TODO(synk): attention dropout / head_mask are identity in eval mode; a
        # training-mode variant would use pltpu.prng_seed + pltpu.prng_random_bits.
        ctx = jnp.dot(p.astype(mxu_dtype), v.astype(mxu_dtype),
                      preferred_element_type=jnp.float32)  # (S, d)
        # Deferred softmax normalization: scale the (S, d) context rather than the
        # (S, S) probabilities (S/d x fewer elementwise ops).
        ctx_parts.append(ctx * pl.reciprocal(l))
    out = ctx_parts[0] if G == 1 else jnp.concatenate(ctx_parts, axis=-1)  # (S, G*d)
    o_ref[0] = out.astype(o_ref.dtype)


def attention_pallas(qkv, hidden_size, num_heads, head_group, use_bf16_mxu=False):
    """qkv: [B, S, 3H] with per-group [q|k|v] column layout -> ctx [B, S, H] (merged heads)."""
    B, S, threeH = qkv.shape
    H = hidden_size
    assert threeH == 3 * H
    d = H // num_heads
    G = head_group
    nG = num_heads // G
    Gd = G * d
    scale = 1.0 / math.sqrt(d)
    mxu_dtype = jnp.bfloat16 if use_bf16_mxu else jnp.float32

    # TODO(synk): for long sequences (full S x S f32 scores approaching VMEM, hits v7x's
    # 64 MiB first) switch to a KV-blocked online-softmax (flash) grid axis.

    itemsize = jnp.dtype(qkv.dtype).itemsize
    cost = pl.CostEstimate(
        flops=4 * B * num_heads * S * S * d,
        transcendentals=B * num_heads * S * S,
        bytes_accessed=itemsize * (B * S * 3 * H + B * S * H),
    )
    req = 4 * (2 * S * 3 * Gd + 2 * S * Gd + 2 * G * S * S + 2 * S * Gd) + (2 << 20)

    ctx = pl.pallas_call(
        functools.partial(_attention_kernel, G=G, d=d, scale=scale, mxu_dtype=mxu_dtype),
        out_shape=jax.ShapeDtypeStruct((B, S, H), qkv.dtype),
        grid_spec=pltpu.PrefetchScalarGridSpec(
            num_scalar_prefetch=0,
            grid=(B, nG),
            in_specs=[pl.BlockSpec((1, S, 3 * Gd), lambda b, g: (b, 0, g))],
            out_specs=pl.BlockSpec((1, S, Gd), lambda b, g: (b, 0, g)),
        ),
        compiler_params=pltpu.CompilerParams(
            dimension_semantics=("parallel", "parallel"),
            vmem_limit_bytes=_vmem_limit(req),
        ),
        cost_estimate=cost,
    )(qkv)
    return ctx


def _pick_head_group(num_heads, head_dim):
    """Smallest G dividing num_heads with G*head_dim a multiple of 128 (lane-dense q/k/v
    loads and ctx stores); falls back to all heads per step (block == full hidden dim,
    which is always a valid BlockSpec)."""
    for G in range(1, num_heads + 1):
        if num_heads % G == 0 and (G * head_dim) % 128 == 0:
            return G
    return num_heads


# ---------------------------------------------------------------------------
# Full GEXTAttention.forward (eval mode, output_attentions=False)
# ---------------------------------------------------------------------------
def gext_attention(hidden_states, params, num_attention_heads, head_mask=None,
                   use_bf16_mxu=False):
    # TODO(synk): head_mask multiply and output_attentions=True probs output are not
    # implemented (default None / False path of the module).
    assert head_mask is None
    B, S, H = hidden_states.shape
    nh = num_attention_heads
    d = H // nh
    G = _pick_head_group(nh, d)
    nG = nh // G
    Gd = G * d

    # Fused QKV projection.  Weight rows are reordered per head-group so the output
    # columns for group g are the contiguous block [q_g | k_g | v_g]; the attention
    # kernel then reads its whole per-step working set from one contiguous block and
    # no wrapper-side q/k/v slicing or split-heads transposes are needed.
    def group_rows(w):                       # [H, H] -> [nG, G*d, H]
        return w.reshape(nG, Gd, H)

    w_qkv = jnp.concatenate(
        [group_rows(params["wq"]), group_rows(params["wk"]), group_rows(params["wv"])],
        axis=1).reshape(3 * H, H)
    b_qkv = jnp.concatenate(
        [params["bq"].reshape(nG, Gd), params["bk"].reshape(nG, Gd),
         params["bv"].reshape(nG, Gd)], axis=1).reshape(3 * H)

    x = hidden_states.reshape(B * S, H)
    qkv = linear_pallas(x, w_qkv, b_qkv, use_bf16_mxu=use_bf16_mxu).reshape(B, S, 3 * H)

    ctx = attention_pallas(qkv, H, nh, G, use_bf16_mxu=use_bf16_mxu)

    # GEXTSelfOutput: dense + dropout (identity in eval); input_tensor is unused.
    out = linear_pallas(ctx.reshape(B * S, H), params["wo"], params["bo"],
                        use_bf16_mxu=use_bf16_mxu)
    return out.reshape(B, S, H)


if __name__ == "__main__":
    def make_params(key, H):
        bound = 1.0 / math.sqrt(H)
        ks = jax.random.split(key, 8)

        def init(kw, kb):
            w = jax.random.uniform(kw, (H, H), minval=-bound, maxval=bound, dtype=jnp.float32)
            b = jax.random.uniform(kb, (H,), minval=-bound, maxval=bound, dtype=jnp.float32)
            return w, b

        wq, bq = init(ks[0], ks[1])
        wk, bk = init(ks[2], ks[3])
        wv, bv = init(ks[4], ks[5])
        wo, bo = init(ks[6], ks[7])
        return dict(wq=wq, bq=bq, wk=wk, bk=bk, wv=wv, bv=bv, wo=wo, bo=bo)

    def reference(x, params, nh):
        # Pure-JAX reference, full-f32 matmuls (same math as the PyTorch module in eval).
        B, S, H = x.shape
        d = H // nh
        hp = jax.lax.Precision.HIGHEST

        def lin(t, w, b):
            return jnp.einsum("mk,nk->mn", t, w, precision=hp) + b

        x2 = x.reshape(B * S, H)
        q = lin(x2, params["wq"], params["bq"]).reshape(B, S, nh, d).transpose(0, 2, 1, 3)
        k = lin(x2, params["wk"], params["bk"]).reshape(B, S, nh, d).transpose(0, 2, 1, 3)
        v = lin(x2, params["wv"], params["bv"]).reshape(B, S, nh, d).transpose(0, 2, 1, 3)
        s = jnp.einsum("bhqd,bhkd->bhqk", q, k, precision=hp) / math.sqrt(d)
        p = jax.nn.softmax(s, axis=-1)
        ctx = jnp.einsum("bhqk,bhkd->bhqd", p, v, precision=hp)
        ctx = ctx.transpose(0, 2, 1, 3).reshape(B * S, H)
        return lin(ctx, params["wo"], params["bo"]).reshape(B, S, H)

    key = jax.random.PRNGKey(0)
    # (B, S, H, num_heads): the tiny module-consistent config, plus one small config
    # that exercises the lane-dense head-group path (d=64 -> G=2 heads per grid step).
    for (B, S, H, NH) in [(2, 8, 32, 4), (2, 8, 256, 4)]:
        key, k_x, k_p = jax.random.split(key, 3)
        hidden_states = jax.random.normal(k_x, (B, S, H), dtype=jnp.float32)
        params = make_params(k_p, H)

        out = jax.block_until_ready(gext_attention(hidden_states, params, NH))
        ref = reference(hidden_states, params, NH)

        assert out.shape == (B, S, H)
        max_err = float(jnp.max(jnp.abs(out - ref)))
        assert max_err < 2e-4, f"config {(B, S, H, NH)}: max abs err = {max_err}"

    print("KERNEL_OK")
</pallas_src>

<mosaic_0001>
module attributes {stable_mosaic.version = 11 : i64} {
  func.func @_linear_kernel(%arg0: i32, %arg1: i32, %arg2: i32, %arg3: memref<16x32xf32, #tpu.memory_space<vmem>>, %arg4: memref<96x32xf32, #tpu.memory_space<vmem>>, %arg5: memref<1x96xf32, #tpu.memory_space<vmem>>, %arg6: memref<16x96xf32, #tpu.memory_space<vmem>>, %arg7: memref<16x96xf32, #tpu.memory_space<vmem>>) attributes {dimension_semantics = [#tpu.dimension_semantics<parallel>, #tpu.dimension_semantics<parallel>, #tpu.dimension_semantics<arbitrary>], iteration_bounds = array<i64: 1, 1, 1>, scalar_prefetch = 0 : i64, scratch_operands = 1 : i64, tpu.core_type = #tpu.core_type<tc>, window_params = [{transform_indices = @transform_0, window_bounds = array<i64: 16, 32>}, {transform_indices = @transform_1, window_bounds = array<i64: 96, 32>}, {transform_indices = @transform_2, window_bounds = array<i64: 1, 96>}, {transform_indices = @transform_3, window_bounds = array<i64: 16, 96>}]} {
    %c0_i32 = arith.constant 0 : i32
    %0 = arith.cmpi eq, %arg2, %c0_i32 : i32
    %1 = arith.extui %0 : i1 to i32
    %c0_i32_0 = arith.constant 0 : i32
    %2 = arith.cmpi ne, %1, %c0_i32_0 : i32
    scf.if %2 {
      %cst_10 = arith.constant 0.000000e+00 : f32
      %12 = vector.broadcast %cst_10 : f32 to vector<16x96xf32>
      %c0_11 = arith.constant 0 : index
      %c0_12 = arith.constant 0 : index
      %13 = vector.load %arg7[%c0_11, %c0_12] : memref<16x96xf32, #tpu.memory_space<vmem>>, vector<16x96xf32>
      tpu.vector_store %arg7[%c0_11, %c0_12], %12 {strides = array<i32>} : memref<16x96xf32, #tpu.memory_space<vmem>>, vector<16x96xf32>,
    } else {
    }
    %c0 = arith.constant 0 : index
    %c0_1 = arith.constant 0 : index
    %3 = vector.load %arg7[%c0, %c0_1] : memref<16x96xf32, #tpu.memory_space<vmem>>, vector<16x96xf32>
    %c0_2 = arith.constant 0 : index
    %c0_3 = arith.constant 0 : index
    %4 = vector.load %arg3[%c0_2, %c0_3] : memref<16x32xf32, #tpu.memory_space<vmem>>, vector<16x32xf32>
    %c0_4 = arith.constant 0 : index
    %c0_5 = arith.constant 0 : index
    %5 = vector.load %arg4[%c0_4, %c0_5] : memref<96x32xf32, #tpu.memory_space<vmem>>, vector<96x32xf32>
    %cst = arith.constant dense<0.000000e+00> : vector<16x96xf32>
    %6 = tpu.matmul %4, %5, %cst {dimension_numbers = #tpu.dot_dimension_numbers<[1], [1], [0], [0], [0, 0, 1, 0], [], []>} : vector<16x32xf32>, vector<96x32xf32>, vector<16x96xf32> -> vector<16x96xf32>
    %7 = arith.addf %3, %6 : vector<16x96xf32>
    %c0_6 = arith.constant 0 : index
    %c0_7 = arith.constant 0 : index
    %8 = vector.load %arg7[%c0_6, %c0_7] : memref<16x96xf32, #tpu.memory_space<vmem>>, vector<16x96xf32>
    tpu.vector_store %arg7[%c0_6, %c0_7], %7 {strides = array<i32>} : memref<16x96xf32, #tpu.memory_space<vmem>>, vector<16x96xf32>,
    %c0_i32_8 = arith.constant 0 : i32
    %9 = arith.cmpi eq, %arg2, %c0_i32_8 : i32
    %10 = arith.extui %9 : i1 to i32
    %c0_i32_9 = arith.constant 0 : i32
    %11 = arith.cmpi ne, %10, %c0_i32_9 : i32
    scf.if %11 {
      %c0_10 = arith.constant 0 : index
      %c0_11 = arith.constant 0 : index
      %12 = vector.load %arg7[%c0_10, %c0_11] : memref<16x96xf32, #tpu.memory_space<vmem>>, vector<16x96xf32>
      %c0_12 = arith.constant 0 : index
      %c0_13 = arith.constant 0 : index
      %13 = vector.load %arg5[%c0_12, %c0_13] : memref<1x96xf32, #tpu.memory_space<vmem>>, vector<1x96xf32>
      %14 = vector.broadcast %13 : vector<1x96xf32> to vector<16x96xf32>
      %15 = arith.addf %12, %14 : vector<16x96xf32>
      %c0_14 = arith.constant 0 : index
      %c0_15 = arith.constant 0 : index
      %16 = vector.load %arg6[%c0_14, %c0_15] : memref<16x96xf32, #tpu.memory_space<vmem>>, vector<16x96xf32>
      tpu.vector_store %arg6[%c0_14, %c0_15], %15 {strides = array<i32>} : memref<16x96xf32, #tpu.memory_space<vmem>>, vector<16x96xf32>,
    } else {
    }
    return
  }
  func.func @transform_0(%arg0: i32, %arg1: i32, %arg2: i32) -> (i32, i32) {
    %c0_i32 = arith.constant 0 : i32
    return %arg0, %arg2 : i32, i32
  }
  func.func @transform_1(%arg0: i32, %arg1: i32, %arg2: i32) -> (i32, i32) {
    %c0_i32 = arith.constant 0 : i32
    return %arg1, %arg2 : i32, i32
  }
  func.func @transform_2(%arg0: i32, %arg1: i32, %arg2: i32) -> (i32, i32) {
    %c0_i32 = arith.constant 0 : i32
    %c0_i32_0 = arith.constant 0 : i32
    return %c0_i32, %arg1 : i32, i32
  }
  func.func @transform_3(%arg0: i32, %arg1: i32, %arg2: i32) -> (i32, i32) {
    %c0_i32 = arith.constant 0 : i32
    return %arg0, %arg1 : i32, i32
  }
}

</mosaic_0001>

<llo_original>
// kernel: tpu_custom_call.1
$region0: #{tpu_custom_call.1}
  #allocation0 [shape = 'u32[]', space=smem, size = 0x4, offset = 0x4, fixed_abs, tag = 'smem constant byte address 0x4 - core index']
  #allocation1 [shape = 'u32[144,128]{1,0:T(1,128)}', space=vmem, size = 0x12000, scoped, tag = 'internal scratch']
  #allocation2 [shape = 'f32[16,96]{1,0:T(8,128)}', space=vmem, size = 0x2000, scoped, tag = 'scratch operand']
  %s0 = inlined_call_operand.vmem [shape: f32[16,32], index: 0, kind: input, shape index: {}]
  %s1 = inlined_call_operand.vmem [shape: f32[96,32], index: 1, kind: input, shape index: {}]
  %s2 = inlined_call_operand.vmem [shape: f32[1,96], index: 2, kind: input, shape index: {}]
  %s3 = inlined_call_operand.hbm [shape: f32[16,96], index: 3, kind: output, shape index: {}]
  %s4 = sld [smem:[#allocation0]]
  $region30: #{tpu_custom_call.1} parent=0
    _
  %s6 = ssub.s32 1, %s4
  %s7 = scalar_select 0, %s6, %s4
  $region1: #{tpu_custom_call.1} parent=0
    #allocation3 [shape = 'u8[8192]{0}', space=vmem, size = 0x2000, scoped, tag = 'output window, operand 0, single buffered']
    #allocation4 [shape = 's32[1]{0}', space=sflag, size = 0x4, scoped, tag = 'scoped memory for tpu_custom_call.1']
    %8 = vsyncpa [#allocation4], 0
    // Predicated region
    $region2: #{tpu_custom_call.1} parent=1 // pred_check
      _
    $region3: #{tpu_custom_call.1} parent=1 // pred_check_branch
      %10 = sbr.rel (0) target = $region5
    $region4: #{tpu_custom_call.1} parent=1 // pred_region
      _
    $region5: #{tpu_custom_call.1} parent=1 // pred_fallthru
      _
    // Predicated region
    $region6: #{tpu_custom_call.1} parent=1 // pred_check
      _
    $region7: #{tpu_custom_call.1} parent=1 // pred_check_branch
      %12 = sbr.rel (0) target = $region9
    $region8: #{tpu_custom_call.1} parent=1 // pred_region
      _
    $region9: #{tpu_custom_call.1} parent=1 // pred_fallthru
      _
    // Predicated region
    $region10: #{tpu_custom_call.1} parent=1 // pred_check
      _
    $region11: #{tpu_custom_call.1} parent=1 // pred_check_branch
      %14 = sbr.rel (0) target = $region13
    $region12: #{tpu_custom_call.1} parent=1 // pred_region
      _
    $region13: #{tpu_custom_call.1} parent=1 // pred_fallthru
      _
    %p15 = scmp.eq.s32.totalorder 0, 0
    // Predicated region
    $region14: #{tpu_custom_call.1} parent=1 // pred_check
      %p16 = pneg %p15
    $region15: #{tpu_custom_call.1} parent=1 // pred_check_branch
      %18 = sbr.rel (%p16) target = $region17
    $region16: #{tpu_custom_call.1} parent=1 // pred_region
      %vm19 = vcmask 785408
      %20 = vst.msk [vmem:[#allocation2] sm:$0xff] %vm19, 0.0
      %21 = vst.msk [vmem:[#allocation2 + $0x8] sm:$0xff] %vm19, 0.0
    $region17: #{tpu_custom_call.1} parent=1 // pred_fallthru
      _
    %v22 = vld [vmem:[#allocation2] sm:$0xff]
    %v23 = vld [vmem:[#allocation2 + $0x8] sm:$0xff]
    %v24 = vld [vmem:[%s0] sm:$0xff]
    %v25 = vld [vmem:[%s0 + $0x8] sm:$0xff]
    %v26 = vld [vmem:[%s1] sm:$0xff]
    %v27 = vld [vmem:[%s1 + $0x8] sm:$0xff]
    %v28 = vld [vmem:[%s1 + $0x10] sm:$0xff]
    %v29 = vld [vmem:[%s1 + $0x18] sm:$0xff]
    %v30 = vld [vmem:[%s1 + $0x20] sm:$0xff]
    %v31 = vld [vmem:[%s1 + $0x28] sm:$0xff]
    %v32 = vld [vmem:[%s1 + $0x30] sm:$0xff]
    %v33 = vld [vmem:[%s1 + $0x38] sm:$0xff]
    %v34 = vld [vmem:[%s1 + $0x40] sm:$0xff]
    %v35 = vld [vmem:[%s1 + $0x48] sm:$0xff]
    %v36 = vld [vmem:[%s1 + $0x50] sm:$0xff]
    %v37 = vld [vmem:[%s1 + $0x58] sm:$0xff]
    %vm38 = vcmask 261120
    %v40 = vsel %vm38, %v24, 0
    %v43 = vsel %vm38, %v25, 0
    %v46 = vsel %vm38, %v26, 0
    %v49 = vsel %vm38, %v27, 0
    %v52 = vsel %vm38, %v28, 0
    %v55 = vsel %vm38, %v29, 0
    %v58 = vsel %vm38, %v30, 0
    %v61 = vsel %vm38, %v31, 0
    %v64 = vsel %vm38, %v32, 0
    %v67 = vsel %vm38, %v33, 0
    %v70 = vsel %vm38, %v34, 0
    %v73 = vsel %vm38, %v35, 0
    %v76 = vsel %vm38, %v36, 0
    %v79 = vsel %vm38, %v37, 0
    %81 = vmatprep.subr.mxu0 0.0
    %82 = vmatpush1.xpose.msra.mxu0 0.0
    %83 = vmatprep.subr.mxu0 0.0
    %84 = vmatpush1.xpose.msra.mxu0 0.0
    %85 = vmatprep.subr.mxu0 0.0
    %86 = vmatpush1.xpose.msra.mxu0 0.0
    %87 = vmatprep.subr.mxu0 0.0
    %88 = vmatpush1.xpose.msra.mxu0 0.0
    %89 = vmatprep.subr.mxu0 0.0
    %90 = vmatpush1.xpose.msra.mxu0 %v79
    %91 = vmatprep.subr.mxu0 0.0
    %92 = vmatpush1.xpose.msra.mxu0 %v76
    %93 = vmatprep.subr.mxu0 0.0
    %94 = vmatpush1.xpose.msra.mxu0 %v73
    %95 = vmatprep.subr.mxu0 0.0
    %96 = vmatpush1.xpose.msra.mxu0 %v70
    %97 = vmatprep.subr.mxu0 0.0
    %98 = vmatpush1.xpose.msra.mxu0 %v67
    %99 = vmatprep.subr.mxu0 0.0
    %100 = vmatpush1.xpose.msra.mxu0 %v64
    %101 = vmatprep.subr.mxu0 0.0
    %102 = vmatpush1.xpose.msra.mxu0 %v61
    %103 = vmatprep.subr.mxu0 0.0
    %104 = vmatpush1.xpose.msra.mxu0 %v58
    %105 = vmatprep.subr.mxu0 0.0
    %106 = vmatpush1.xpose.msra.mxu0 %v55
    %107 = vmatprep.subr.mxu0 0.0
    %108 = vmatpush1.xpose.msra.mxu0 %v52
    %109 = vmatprep.subr.mxu0 0.0
    %110 = vmatpush1.xpose.msra.mxu0 %v49
    %111 = vmatprep.subr.mxu0 0.0
    %112 = vmatpush1.xpose.msra.mxu0 %v46
    %113 = vmatprep.subr.mxu0 0.0
    %114 = vmatpush2.xpose.msra.mxu0 0.0
    %115 = vmatprep.subr.mxu0 0.0
    %116 = vmatpush2.xpose.msra.mxu0 0.0
    %117 = vmatprep.subr.mxu0 0.0
    %118 = vmatpush2.xpose.msra.mxu0 0.0
    %119 = vmatprep.subr.mxu0 0.0
    %120 = vmatpush2.xpose.msra.mxu0 0.0
    %121 = vmatprep.subr.mxu0 0.0
    %122 = vmatpush2.xpose.msra.mxu0 0.0
    %123 = vmatprep.subr.mxu0 0.0
    %124 = vmatpush2.xpose.msra.mxu0 0.0
    %125 = vmatprep.subr.mxu0 0.0
    %126 = vmatpush2.xpose.msra.mxu0 0.0
    %127 = vmatprep.subr.mxu0 0.0
    %128 = vmatpush2.xpose.msra.mxu0 0.0
    %129 = vmatprep.subr.mxu0 0.0
    %130 = vmatpush2.xpose.msra.mxu0 0.0
    %131 = vmatprep.subr.mxu0 0.0
    %132 = vmatpush2.xpose.msra.mxu0 0.0
    %133 = vmatprep.subr.mxu0 0.0
    %134 = vmatpush2.xpose.msra.mxu0 0.0
    %135 = vmatprep.subr.mxu0 0.0
    %136 = vmatpush2.xpose.msra.mxu0 0.0
    %137 = vmatprep.subr.mxu0 0.0
    %138 = vmatpush2.xpose.msra.mxu0 0.0
    %139 = vmatprep.subr.mxu0 0.0
    %140 = vmatpush2.xpose.msra.mxu0 0.0
    %141 = vmatprep.subr.mxu0 0.0
    %142 = vmatpush2.xpose.msra.mxu0 0.0
    %143 = vmatprep.subr.mxu0 0.0
    %144 = vmatpush2.xpose.msra.mxu0 0.0
    %145 = vmatprep.mubr.f32.mxu0 0.0
    %146 = vmatmul.mubr.f32.gmra.mxu0 %v40
    %v147 = vpop.f32.mrf.mxu0
    %v148 = vadd.f32 0.0, %v147
    %v149 = vpop.f32.mrf.mxu0
    %150 = vmatprep.mubr.f32.mxu0 0.0
    %151 = vmatmul.mubr.f32.gmra.mxu0 %v43
    %v152 = vpop.f32.mrf.mxu0
    %v153 = vadd.f32 0.0, %v152
    %v154 = vpop.f32.mrf.mxu0
    %155 = vdwg.mxu0
    %v156 = vadd.f32 %v22, %v148
    %v157 = vadd.f32 %v23, %v153
    %vm158 = vcmask 785408
    %159 = vst.msk [vmem:[#allocation2] sm:$0xff] %vm158, %v156
    %160 = vst.msk [vmem:[#allocation2 + $0x8] sm:$0xff] %vm158, %v157
    // Predicated region
    $region18: #{tpu_custom_call.1} parent=1 // pred_check
      %p161 = pneg %p15
    $region19: #{tpu_custom_call.1} parent=1 // pred_check_branch
      %163 = sbr.rel (%p161) target = $region21
    $region20: #{tpu_custom_call.1} parent=1 // pred_region
      %v164 = vld [vmem:[#allocation2] sm:$0xff]
      %v165 = vld [vmem:[#allocation2 + $0x8] sm:$0xff]
      %v166 = vld [vmem:[%s2] sm:$0x1]
      %v168 = vlaneseq
      %v169 = vshrl.u32 %v168, 7
      %v170 = vsub.s32 0, %v169
      %v171 = vrot.slane %v166, %v170
      %v173 = vadd.f32 %v164, %v171
      %v174 = vadd.f32 %v165, %v171
      %175 = vst.msk [vmem:[#allocation3] sm:$0xff] %vm158, %v173
      %176 = vst.msk [vmem:[#allocation3 + $0x8] sm:$0xff] %vm158, %v174
    $region21: #{tpu_custom_call.1} parent=1 // pred_fallthru
      _
    // Predicated region
    $region22: #{tpu_custom_call.1} parent=1 // pred_check
      _
    $region23: #{tpu_custom_call.1} parent=1 // pred_check_branch
      %178 = sbr.rel (0) target = $region25
    $region24: #{tpu_custom_call.1} parent=1 // pred_region
      %s180 = ssub.s32 256, 256
      %181 = vsyncadd [#allocation4], %s180
      %s182 = sshll.u32 [#allocation3], 4
      %s183 = int_to_ptr.vmem [resolvable:$true] %s182
      %188 = dma.vmem_to_hbm [thread:$0]  %s183, 256, %s3, [#allocation4], 128, 128, 8
    $region25: #{tpu_custom_call.1} parent=1 // pred_fallthru
      _
    // Predicated region
    $region26: #{tpu_custom_call.1} parent=1 // pred_check
      _
    $region27: #{tpu_custom_call.1} parent=1 // pred_check_branch
      %190 = sbr.rel (0) target = $region29
    $region28: #{tpu_custom_call.1} parent=1 // pred_region
      %191 = dma.done [#allocation4], 256
    $region29: #{tpu_custom_call.1} parent=1 // pred_fallthru
      _
    %192 = vsyncpa [#allocation4], 1

</llo_original>
